<compile_context>
chip_gen: v7x
topology: tpu7x:2x2x1
jax: 0.10.0
libtpu: 0.0.40
codegen_flags: <defaults>
</compile_context>

<pallas_src>
import functools
import math

import numpy as np
import jax
import jax.numpy as jnp
from jax.experimental import pallas as pl
from jax.experimental.pallas import tpu as pltpu


_SQRT2 = math.sqrt(2.0)
_NEG_SLOPE = 0.01                     # nn.LeakyReLU() default negative_slope
_MiB = 1024 * 1024
_HEADROOM_BYTES = 8 * _MiB            # compiler-internal scratch headroom


# ---------------------------------------------------------------------------
# Hardware-aware budgeting helpers.
# ---------------------------------------------------------------------------
def _vmem_capacity_bytes():
    """Physical VMEM per TensorCore; conservative fallback if query fails."""
    try:
        info = pltpu.get_tpu_info()
        cap = getattr(info, "vmem_capacity_bytes", None)
        if cap:
            return int(cap)
    except Exception:
        pass
    return 64 * _MiB                   # v7x floor; safe on v5e/v6e too


def _fused_resident_bytes(z, wt, b):
    wt_bytes = wt.size * wt.dtype.itemsize
    b_bytes = b.size * b.dtype.itemsize
    z_bytes = z.size * z.dtype.itemsize
    out_bytes = z.size * z.dtype.itemsize
    return wt_bytes + b_bytes + z_bytes + out_bytes


def _pick_layers_per_step(L, D, itemsize, capacity, fixed_bytes):
    """Largest divisor G of L s.t. double-buffered G-layer weight block fits."""
    per_layer = 2 * D * D * itemsize          # double-buffered
    budget = max(int(capacity * 0.5) - fixed_bytes, per_layer)
    max_g = max(budget // per_layer, 1)
    g = 1
    for cand in range(1, L + 1):
        if L % cand == 0 and cand <= max_g:
            g = cand
    return g


# ---------------------------------------------------------------------------
# One-time parameter prep (call at setup, NOT per forward pass).
# ---------------------------------------------------------------------------
def prepare_mapping_params(w, b, *, lr_multiplyer=0.01, param_dtype=jnp.bfloat16):
    """w: (L, out, in) PyTorch nn.Linear layout; b: (L, out).

    Returns (wt, b_folded):
      wt       : (L, in, out) pre-transposed weights in `param_dtype` (bf16).
      b_folded : (L, out) f32 bias with b_gain*sqrt(2) already folded in.
    """
    wt = jnp.transpose(w, (0, 2, 1)).astype(param_dtype)
    b_folded = b.astype(jnp.float32) * (lr_multiplyer * _SQRT2)
    return wt, b_folded


# ---------------------------------------------------------------------------
# Variant 1: fused -- grid-less, all layers resident in VMEM.
# ---------------------------------------------------------------------------
def _mapping_fused_kernel(z_ref, wt_ref, b_ref, o_ref, *, num_layers, out_scale):
    x = z_ref[...].astype(jnp.float32)                           # (B, D)
    for l in range(num_layers):                                  # static unroll
        y = jnp.dot(x.astype(wt_ref.dtype), wt_ref[l],
                    preferred_element_type=jnp.float32)          # MXU, f32 acc
        y = y * out_scale + b_ref[l]                             # folded gains
        x = jnp.where(y >= 0.0, y, _NEG_SLOPE * y)               # leaky_relu
    o_ref[...] = x.astype(o_ref.dtype)


def _mapping_network_fused(z, wt, b, *, out_scale, capacity, cost):
    B, D = z.shape
    L = wt.shape[0]
    resident = _fused_resident_bytes(z, wt, b)
    vmem_limit = int(min(capacity, max(32 * _MiB, resident + _HEADROOM_BYTES)))
    kernel = functools.partial(
        _mapping_fused_kernel, num_layers=L, out_scale=out_scale)
    vmem = pltpu.MemorySpace.VMEM
    return pl.pallas_call(
        kernel,
        out_shape=jax.ShapeDtypeStruct((B, D), z.dtype),
        in_specs=[pl.BlockSpec(memory_space=vmem),      # z
                  pl.BlockSpec(memory_space=vmem),      # wt (all layers)
                  pl.BlockSpec(memory_space=vmem)],     # bias (all layers)
        out_specs=pl.BlockSpec(memory_space=vmem),
        compiler_params=pltpu.CompilerParams(vmem_limit_bytes=vmem_limit),
        cost_estimate=cost,
    )(z, wt, b)


# ---------------------------------------------------------------------------
# Variant 2: streamed -- grid=(L//G,), G layers' weights per step, resident acc.
# ---------------------------------------------------------------------------
def _mapping_streamed_kernel(z_ref, wt_ref, b_ref, o_ref, acc_ref, *,
                             layers_per_step, out_scale):
    g = pl.program_id(0)

    @pl.when(g == 0)
    def _():
        acc_ref[...] = z_ref[...].astype(jnp.float32)

    x = acc_ref[...]
    base = g * layers_per_step
    for j in range(layers_per_step):                             # static unroll
        y = jnp.dot(x.astype(wt_ref.dtype), wt_ref[j],
                    preferred_element_type=jnp.float32)
        y = y * out_scale + b_ref[base + j]
        x = jnp.where(y >= 0.0, y, _NEG_SLOPE * y)
    acc_ref[...] = x

    @pl.when(g == pl.num_programs(0) - 1)
    def _():
        o_ref[...] = acc_ref[...].astype(o_ref.dtype)


def _mapping_network_streamed(z, wt, b, *, out_scale, capacity, cost,
                              layers_per_step=None):
    B, D = z.shape
    L = wt.shape[0]
    fixed_bytes = (b.size * b.dtype.itemsize          # resident bias
                   + 2 * z.size * z.dtype.itemsize    # z + out blocks
                   + B * D * 4)                       # f32 accumulator
    if layers_per_step is None:
        layers_per_step = _pick_layers_per_step(
            L, D, wt.dtype.itemsize, capacity, fixed_bytes)
    if L % layers_per_step != 0:
        raise ValueError(f"layers_per_step={layers_per_step} must divide L={L}")
    G = layers_per_step
    step_bytes = 2 * G * D * D * wt.dtype.itemsize    # double-buffered weights
    vmem_limit = int(min(capacity,
                         max(32 * _MiB, fixed_bytes + step_bytes + _HEADROOM_BYTES)))

    kernel = functools.partial(
        _mapping_streamed_kernel, layers_per_step=G, out_scale=out_scale)
    return pl.pallas_call(
        kernel,
        out_shape=jax.ShapeDtypeStruct((B, D), z.dtype),
        grid_spec=pltpu.PrefetchScalarGridSpec(
            num_scalar_prefetch=0,
            grid=(L // G,),
            in_specs=[
                pl.BlockSpec((B, D), lambda g: (0, 0)),        # z (read once)
                pl.BlockSpec((G, D, D), lambda g: (g, 0, 0)),  # G layers of W
                pl.BlockSpec((L, D), lambda g: (0, 0)),        # full bias, resident
            ],
            out_specs=pl.BlockSpec((B, D), lambda g: (0, 0)),
            # f32 accumulator resident across the (sequential) layer axis.
            scratch_shapes=[pltpu.VMEM((B, D), jnp.float32)],
        ),
        # Layer axis must stay "arbitrary": output/accumulator are resident
        # across it (same output block every step).
        compiler_params=pltpu.CompilerParams(
            dimension_semantics=("arbitrary",),
            vmem_limit_bytes=vmem_limit),
        cost_estimate=cost,
    )(z, wt, b)


# ---------------------------------------------------------------------------
# Public entry point.
# ---------------------------------------------------------------------------
def mapping_network(z, wt, b, *, lr_multiplyer=0.01, impl=None,
                    layers_per_step=None):
    """Forward pass of MappingNetwork.

    z:  (B, D) activations.
    wt: (L, D, D) pre-transposed bf16 weights from `prepare_mapping_params`.
    b:  (L, D) f32 biases with b_gain*sqrt(2) already folded in
        (from `prepare_mapping_params` with the SAME lr_multiplyer).
    """
    B, D = z.shape
    L, D_in, D_out = wt.shape
    assert D_in == D and D_out == D and b.shape == (L, D)

    # leaky_relu(s*x) == s*leaky_relu(x) for s > 0, so w_gain*sqrt(2) folds in
    # front of the activation; the matching bias fold happened at prep time.
    out_scale = (lr_multiplyer / math.sqrt(D_in)) * _SQRT2

    capacity = _vmem_capacity_bytes()
    cost = pl.CostEstimate(
        flops=2 * B * D * D * L,
        transcendentals=0,
        bytes_accessed=(wt.size * wt.dtype.itemsize
                        + b.size * b.dtype.itemsize
                        + 2 * z.size * z.dtype.itemsize))

    if impl is None:
        resident = _fused_resident_bytes(z, wt, b)
        # Fused (one HBM read of the weights, zero grid-step overhead) whenever
        # it fits with headroom: ~92 MiB of weights on v5e/v6e, ~44 MiB on v7x.
        impl = ("fused"
                if resident + _HEADROOM_BYTES <= int(capacity * 0.75)
                else "streamed")

    if impl == "fused":
        return _mapping_network_fused(
            z, wt, b, out_scale=out_scale, capacity=capacity, cost=cost)
    elif impl == "streamed":
        return _mapping_network_streamed(
            z, wt, b, out_scale=out_scale, capacity=capacity, cost=cost,
            layers_per_step=layers_per_step)
    else:
        raise ValueError(f"unknown impl: {impl}")


# ---------------------------------------------------------------------------
# Pure-JAX references.
# ---------------------------------------------------------------------------
def mapping_network_ref_kernel_math(z, w, b, *, lr_multiplyer=0.01,
                                    param_dtype=jnp.bfloat16):
    """Mirror of the kernel math (same bf16 rounding of weights/activations)."""
    D = z.shape[-1]
    out_scale = lr_multiplyer / math.sqrt(D) * _SQRT2
    bias_scale = lr_multiplyer * _SQRT2
    x = z.astype(jnp.float32)
    for l in range(w.shape[0]):
        wt = jnp.transpose(w[l]).astype(param_dtype)
        y = jnp.dot(x.astype(param_dtype), wt,
                    preferred_element_type=jnp.float32)
        y = y * out_scale + b[l].astype(jnp.float32) * bias_scale
        x = jnp.where(y >= 0.0, y, _NEG_SLOPE * y)
    return x.astype(z.dtype)


def mapping_network_ref_f32(z, w, b, *, lr_multiplyer=0.01):
    """Exact f32 reference mirroring the PyTorch module op-for-op."""
    D = z.shape[-1]
    w_gain = lr_multiplyer / math.sqrt(D)
    b_gain = lr_multiplyer
    x = z.astype(jnp.float32)
    for l in range(w.shape[0]):
        x = x @ (w[l] * w_gain).T + b[l] * b_gain
        x = jnp.where(x >= 0.0, x, _NEG_SLOPE * x) * _SQRT2
    return x.astype(z.dtype)


if __name__ == "__main__":
    B, D, L = 8, 128, 4          # batch, latent_dim, num_layers
    lr_multiplyer = 0.01

    key = jax.random.PRNGKey(0)
    kz, kw, kb = jax.random.split(key, 3)

    z = jax.random.normal(kz, (B, D), dtype=jnp.float32)
    # Module __init__: w = randn(out, in) / lr_multiplyer ; default bias_init=0
    # gives zeros, but we use a nonzero bias here to exercise the bias/fold path.
    w = jax.random.normal(kw, (L, D, D), dtype=jnp.float32) / lr_multiplyer
    b = jax.random.normal(kb, (L, D), dtype=jnp.float32)

    wt, bp = prepare_mapping_params(w, b, lr_multiplyer=lr_multiplyer)  # one-time setup

    out_auto = jax.block_until_ready(
        mapping_network(z, wt, bp, lr_multiplyer=lr_multiplyer))
    out_fused = jax.block_until_ready(
        mapping_network(z, wt, bp, lr_multiplyer=lr_multiplyer, impl="fused"))
    out_str1 = jax.block_until_ready(
        mapping_network(z, wt, bp, lr_multiplyer=lr_multiplyer,
                        impl="streamed", layers_per_step=1))
    out_str2 = jax.block_until_ready(
        mapping_network(z, wt, bp, lr_multiplyer=lr_multiplyer,
                        impl="streamed", layers_per_step=2))

    ref_mirror = mapping_network_ref_kernel_math(z, w, b, lr_multiplyer=lr_multiplyer)
    ref_f32 = mapping_network_ref_f32(z, w, b, lr_multiplyer=lr_multiplyer)

    # Kernel correctness (same math / same bf16 rounding as the kernels).
    for out in (out_auto, out_fused, out_str1, out_str2):
        np.testing.assert_allclose(np.asarray(out), np.asarray(ref_mirror),
                                   rtol=1e-4, atol=1e-4)
    # Semantic fidelity vs. the exact f32 PyTorch math (tolerance = bf16
    # weight/activation quantization accumulated over L layers).
    np.testing.assert_allclose(np.asarray(out_fused), np.asarray(ref_f32),
                               rtol=5e-2, atol=5e-2)

    print("KERNEL_OK")
</pallas_src>

<mosaic_0001>
module attributes {stable_mosaic.version = 11 : i64} {
  func.func @_mapping_fused_kernel(%arg0: memref<8x128xf32, #tpu.memory_space<vmem>>, %arg1: memref<4x128x128xbf16, #tpu.memory_space<vmem>>, %arg2: memref<4x128xf32, #tpu.memory_space<vmem>>, %arg3: memref<8x128xf32, #tpu.memory_space<vmem>>) attributes {dimension_semantics = [], scalar_prefetch = 0 : i64, scratch_operands = 0 : i64, tpu.core_type = #tpu.core_type<tc>} {
    %c0 = arith.constant 0 : index
    %c0_0 = arith.constant 0 : index
    %0 = vector.load %arg0[%c0, %c0_0] : memref<8x128xf32, #tpu.memory_space<vmem>>, vector<8x128xf32>
    %1 = arith.truncf %0 : vector<8x128xf32> to vector<8x128xbf16>
    %c0_1 = arith.constant 0 : index
    %c0_2 = arith.constant 0 : index
    %c0_3 = arith.constant 0 : index
    %2 = vector.load %arg1[%c0_1, %c0_2, %c0_3] : memref<4x128x128xbf16, #tpu.memory_space<vmem>>, vector<1x128x128xbf16>
    %3 = vector.shape_cast %2 : vector<1x128x128xbf16> to vector<128x128xbf16>
    %cst = arith.constant dense<0.000000e+00> : vector<8x128xf32>
    %4 = tpu.matmul %1, %3, %cst {dimension_numbers = #tpu.dot_dimension_numbers<[1], [0], [0], [1], [0, 0, 1, 1], [], []>} : vector<8x128xbf16>, vector<128x128xbf16>, vector<8x128xf32> -> vector<8x128xf32>
    %cst_4 = arith.constant 1.250000e-03 : f32
    %5 = vector.broadcast %cst_4 : f32 to vector<8x128xf32>
    %6 = arith.mulf %4, %5 : vector<8x128xf32>
    %c0_5 = arith.constant 0 : index
    %c0_6 = arith.constant 0 : index
    %7 = vector.load %arg2[%c0_5, %c0_6] : memref<4x128xf32, #tpu.memory_space<vmem>>, vector<1x128xf32>
    %8 = vector.shape_cast %7 : vector<1x128xf32> to vector<128xf32>
    %9 = vector.shape_cast %8 : vector<128xf32> to vector<1x128xf32>
    %10 = vector.broadcast %9 : vector<1x128xf32> to vector<8x128xf32>
    %11 = arith.addf %6, %10 : vector<8x128xf32>
    %cst_7 = arith.constant 0.000000e+00 : f32
    %12 = vector.broadcast %cst_7 : f32 to vector<8x128xf32>
    %13 = arith.cmpf oge, %11, %12 : vector<8x128xf32>
    %cst_8 = arith.constant 0.00999999977 : f32
    %14 = vector.broadcast %cst_8 : f32 to vector<8x128xf32>
    %15 = arith.mulf %14, %11 : vector<8x128xf32>
    %16 = arith.select %13, %11, %15 : vector<8x128xi1>, vector<8x128xf32>
    %17 = arith.truncf %16 : vector<8x128xf32> to vector<8x128xbf16>
    %c1 = arith.constant 1 : index
    %c0_9 = arith.constant 0 : index
    %c0_10 = arith.constant 0 : index
    %18 = vector.load %arg1[%c1, %c0_9, %c0_10] : memref<4x128x128xbf16, #tpu.memory_space<vmem>>, vector<1x128x128xbf16>
    %19 = vector.shape_cast %18 : vector<1x128x128xbf16> to vector<128x128xbf16>
    %cst_11 = arith.constant dense<0.000000e+00> : vector<8x128xf32>
    %20 = tpu.matmul %17, %19, %cst_11 {dimension_numbers = #tpu.dot_dimension_numbers<[1], [0], [0], [1], [0, 0, 1, 1], [], []>} : vector<8x128xbf16>, vector<128x128xbf16>, vector<8x128xf32> -> vector<8x128xf32>
    %cst_12 = arith.constant 1.250000e-03 : f32
    %21 = vector.broadcast %cst_12 : f32 to vector<8x128xf32>
    %22 = arith.mulf %20, %21 : vector<8x128xf32>
    %c1_13 = arith.constant 1 : index
    %c0_14 = arith.constant 0 : index
    %23 = vector.load %arg2[%c1_13, %c0_14] : memref<4x128xf32, #tpu.memory_space<vmem>>, vector<1x128xf32>
    %24 = vector.shape_cast %23 : vector<1x128xf32> to vector<128xf32>
    %25 = vector.shape_cast %24 : vector<128xf32> to vector<1x128xf32>
    %26 = vector.broadcast %25 : vector<1x128xf32> to vector<8x128xf32>
    %27 = arith.addf %22, %26 : vector<8x128xf32>
    %cst_15 = arith.constant 0.000000e+00 : f32
    %28 = vector.broadcast %cst_15 : f32 to vector<8x128xf32>
    %29 = arith.cmpf oge, %27, %28 : vector<8x128xf32>
    %cst_16 = arith.constant 0.00999999977 : f32
    %30 = vector.broadcast %cst_16 : f32 to vector<8x128xf32>
    %31 = arith.mulf %30, %27 : vector<8x128xf32>
    %32 = arith.select %29, %27, %31 : vector<8x128xi1>, vector<8x128xf32>
    %33 = arith.truncf %32 : vector<8x128xf32> to vector<8x128xbf16>
    %c2 = arith.constant 2 : index
    %c0_17 = arith.constant 0 : index
    %c0_18 = arith.constant 0 : index
    %34 = vector.load %arg1[%c2, %c0_17, %c0_18] : memref<4x128x128xbf16, #tpu.memory_space<vmem>>, vector<1x128x128xbf16>
    %35 = vector.shape_cast %34 : vector<1x128x128xbf16> to vector<128x128xbf16>
    %cst_19 = arith.constant dense<0.000000e+00> : vector<8x128xf32>
    %36 = tpu.matmul %33, %35, %cst_19 {dimension_numbers = #tpu.dot_dimension_numbers<[1], [0], [0], [1], [0, 0, 1, 1], [], []>} : vector<8x128xbf16>, vector<128x128xbf16>, vector<8x128xf32> -> vector<8x128xf32>
    %cst_20 = arith.constant 1.250000e-03 : f32
    %37 = vector.broadcast %cst_20 : f32 to vector<8x128xf32>
    %38 = arith.mulf %36, %37 : vector<8x128xf32>
    %c2_21 = arith.constant 2 : index
    %c0_22 = arith.constant 0 : index
    %39 = vector.load %arg2[%c2_21, %c0_22] : memref<4x128xf32, #tpu.memory_space<vmem>>, vector<1x128xf32>
    %40 = vector.shape_cast %39 : vector<1x128xf32> to vector<128xf32>
    %41 = vector.shape_cast %40 : vector<128xf32> to vector<1x128xf32>
    %42 = vector.broadcast %41 : vector<1x128xf32> to vector<8x128xf32>
    %43 = arith.addf %38, %42 : vector<8x128xf32>
    %cst_23 = arith.constant 0.000000e+00 : f32
    %44 = vector.broadcast %cst_23 : f32 to vector<8x128xf32>
    %45 = arith.cmpf oge, %43, %44 : vector<8x128xf32>
    %cst_24 = arith.constant 0.00999999977 : f32
    %46 = vector.broadcast %cst_24 : f32 to vector<8x128xf32>
    %47 = arith.mulf %46, %43 : vector<8x128xf32>
    %48 = arith.select %45, %43, %47 : vector<8x128xi1>, vector<8x128xf32>
    %49 = arith.truncf %48 : vector<8x128xf32> to vector<8x128xbf16>
    %c3 = arith.constant 3 : index
    %c0_25 = arith.constant 0 : index
    %c0_26 = arith.constant 0 : index
    %50 = vector.load %arg1[%c3, %c0_25, %c0_26] : memref<4x128x128xbf16, #tpu.memory_space<vmem>>, vector<1x128x128xbf16>
    %51 = vector.shape_cast %50 : vector<1x128x128xbf16> to vector<128x128xbf16>
    %cst_27 = arith.constant dense<0.000000e+00> : vector<8x128xf32>
    %52 = tpu.matmul %49, %51, %cst_27 {dimension_numbers = #tpu.dot_dimension_numbers<[1], [0], [0], [1], [0, 0, 1, 1], [], []>} : vector<8x128xbf16>, vector<128x128xbf16>, vector<8x128xf32> -> vector<8x128xf32>
    %cst_28 = arith.constant 1.250000e-03 : f32
    %53 = vector.broadcast %cst_28 : f32 to vector<8x128xf32>
    %54 = arith.mulf %52, %53 : vector<8x128xf32>
    %c3_29 = arith.constant 3 : index
    %c0_30 = arith.constant 0 : index
    %55 = vector.load %arg2[%c3_29, %c0_30] : memref<4x128xf32, #tpu.memory_space<vmem>>, vector<1x128xf32>
    %56 = vector.shape_cast %55 : vector<1x128xf32> to vector<128xf32>
    %57 = vector.shape_cast %56 : vector<128xf32> to vector<1x128xf32>
    %58 = vector.broadcast %57 : vector<1x128xf32> to vector<8x128xf32>
    %59 = arith.addf %54, %58 : vector<8x128xf32>
    %cst_31 = arith.constant 0.000000e+00 : f32
    %60 = vector.broadcast %cst_31 : f32 to vector<8x128xf32>
    %61 = arith.cmpf oge, %59, %60 : vector<8x128xf32>
    %cst_32 = arith.constant 0.00999999977 : f32
    %62 = vector.broadcast %cst_32 : f32 to vector<8x128xf32>
    %63 = arith.mulf %62, %59 : vector<8x128xf32>
    %64 = arith.select %61, %59, %63 : vector<8x128xi1>, vector<8x128xf32>
    %c0_33 = arith.constant 0 : index
    %c0_34 = arith.constant 0 : index
    %65 = vector.load %arg3[%c0_33, %c0_34] : memref<8x128xf32, #tpu.memory_space<vmem>>, vector<8x128xf32>
    tpu.vector_store %arg3[%c0_33, %c0_34], %64 {strides = array<i32>} : memref<8x128xf32, #tpu.memory_space<vmem>>, vector<8x128xf32>,
    return
  }
}

</mosaic_0001>

<llo_original>
// kernel: tpu_custom_call.1
$region0: #{tpu_custom_call.1}
  #allocation0 [shape = 'u32[]', space=smem, size = 0x4, offset = 0x4, fixed_abs, tag = 'smem constant byte address 0x4 - core index']
  #allocation1 [shape = 'u32[144,128]{1,0:T(1,128)}', space=vmem, size = 0x12000, scoped, tag = 'internal scratch']
  %s0 = inlined_call_operand.hbm [shape: f32[8,128], index: 0, kind: input, shape index: {}]
  %s1 = inlined_call_operand.hbm [shape: bf16[4,128,128], index: 1, kind: input, shape index: {}]
  %s2 = inlined_call_operand.vmem [shape: f32[4,128], index: 2, kind: input, shape index: {}]
  %s3 = inlined_call_operand.hbm [shape: f32[8,128], index: 3, kind: output, shape index: {}]
  %s4 = sld [smem:[#allocation0]]
  $region30: #{tpu_custom_call.1} parent=0
    _
  %s6 = ssub.s32 1, %s4
  %s7 = scalar_select 0, %s6, %s4
  $region1: #{tpu_custom_call.1} parent=0
    #allocation2 [shape = 'u8[4096]{0}', space=vmem, size = 0x1000, scoped, tag = 'input window, operand 0, single buffered']
    #allocation3 [shape = 's32[1]{0}', space=sflag, size = 0x4, scoped, tag = 'scoped memory for tpu_custom_call.1']
    #allocation4 [shape = 's32[1]{0}', space=sflag, size = 0x4, scoped, tag = 'scoped memory for tpu_custom_call.1']
    #allocation5 [shape = 'u8[131072]{0}', space=vmem, size = 0x20000, scoped, tag = 'input window, operand 1, single buffered']
    #allocation6 [shape = 's32[1]{0}', space=sflag, size = 0x4, scoped, tag = 'scoped memory for tpu_custom_call.1']
    #allocation7 [shape = 'u8[4096]{0}', space=vmem, size = 0x1000, scoped, tag = 'output window, operand 0, single buffered']
    %8 = vsyncpa [#allocation3], 0
    %9 = vsyncpa [#allocation6], 0
    %10 = vsyncpa [#allocation4], 0
    // Predicated region
    $region2: #{tpu_custom_call.1} parent=1 // pred_check
      _
    $region3: #{tpu_custom_call.1} parent=1 // pred_check_branch
      %12 = sbr.rel (0) target = $region5
    $region4: #{tpu_custom_call.1} parent=1 // pred_region
      %s14 = ssub.s32 128, 128
      %15 = vsyncadd [#allocation3], %s14
      %s17 = sshll.u32 [#allocation2], 4
      %s18 = int_to_ptr.vmem [resolvable:$true] %s17
      %20 = dma.hbm_to_vmem [thread:$0]  %s0, 128, %s18, [#allocation3]
    $region5: #{tpu_custom_call.1} parent=1 // pred_fallthru
      _
    // Predicated region
    $region6: #{tpu_custom_call.1} parent=1 // pred_check
      _
    $region7: #{tpu_custom_call.1} parent=1 // pred_check_branch
      %22 = sbr.rel (0) target = $region9
    $region8: #{tpu_custom_call.1} parent=1 // pred_region
      %s24 = ssub.s32 4096, 4096
      %25 = vsyncadd [#allocation6], %s24
      %s26 = sshll.u32 [#allocation5], 4
      %s27 = int_to_ptr.vmem [resolvable:$true] %s26
      %32 = dma.hbm_to_vmem [thread:$0]  %s1, 4096, %s27, [#allocation6], 64, 64, 4
    $region9: #{tpu_custom_call.1} parent=1 // pred_fallthru
      _
    // Predicated region
    $region10: #{tpu_custom_call.1} parent=1 // pred_check
      _
    $region11: #{tpu_custom_call.1} parent=1 // pred_check_branch
      %34 = sbr.rel (0) target = $region13
    $region12: #{tpu_custom_call.1} parent=1 // pred_region
      _
    $region13: #{tpu_custom_call.1} parent=1 // pred_fallthru
      _
    // Predicated region
    $region14: #{tpu_custom_call.1} parent=1 // pred_check
      _
    $region15: #{tpu_custom_call.1} parent=1 // pred_check_branch
      %36 = sbr.rel (0) target = $region17
    $region16: #{tpu_custom_call.1} parent=1 // pred_region
      %37 = dma.done [#allocation3], 128
    $region17: #{tpu_custom_call.1} parent=1 // pred_fallthru
      _
    // Predicated region
    $region18: #{tpu_custom_call.1} parent=1 // pred_check
      _
    $region19: #{tpu_custom_call.1} parent=1 // pred_check_branch
      %39 = sbr.rel (0) target = $region21
    $region20: #{tpu_custom_call.1} parent=1 // pred_region
      %40 = dma.done [#allocation6], 4096
    $region21: #{tpu_custom_call.1} parent=1 // pred_fallthru
      _
    %v42 = vld [vmem:[#allocation2] sm:$0xff]
    %v43 = vpack.c.bf16 %v42, %v42
    %v44 = vld [vmem:[#allocation5] sm:$0xf]
    %v45 = vld [vmem:[#allocation5 + $0x4] sm:$0xf]
    %v46 = vld [vmem:[#allocation5 + $0x8] sm:$0xf]
    %v47 = vld [vmem:[#allocation5 + $0xc] sm:$0xf]
    %v48 = vld [vmem:[#allocation5 + $0x10] sm:$0xf]
    %v49 = vld [vmem:[#allocation5 + $0x14] sm:$0xf]
    %v50 = vld [vmem:[#allocation5 + $0x18] sm:$0xf]
    %v51 = vld [vmem:[#allocation5 + $0x1c] sm:$0xf]
    %v52 = vld [vmem:[#allocation5 + $0x20] sm:$0xf]
    %v53 = vld [vmem:[#allocation5 + $0x24] sm:$0xf]
    %v54 = vld [vmem:[#allocation5 + $0x28] sm:$0xf]
    %v55 = vld [vmem:[#allocation5 + $0x2c] sm:$0xf]
    %v56 = vld [vmem:[#allocation5 + $0x30] sm:$0xf]
    %v57 = vld [vmem:[#allocation5 + $0x34] sm:$0xf]
    %v58 = vld [vmem:[#allocation5 + $0x38] sm:$0xf]
    %v59 = vld [vmem:[#allocation5 + $0x3c] sm:$0xf]
    %v76 = vunpack.c.l.b16 %v44
    %v77 = vunpack.c.l.b16 %v45
    %v78 = vunpack.c.l.b16 %v46
    %v79 = vunpack.c.l.b16 %v47
    %v80 = vunpack.c.l.b16 %v48
    %v81 = vunpack.c.l.b16 %v49
    %v82 = vunpack.c.l.b16 %v50
    %v83 = vunpack.c.l.b16 %v51
    %v84 = vunpack.c.l.b16 %v52
    %v85 = vunpack.c.l.b16 %v53
    %v86 = vunpack.c.l.b16 %v54
    %v87 = vunpack.c.l.b16 %v55
    %v88 = vunpack.c.l.b16 %v56
    %v89 = vunpack.c.l.b16 %v57
    %v90 = vunpack.c.l.b16 %v58
    %v91 = vunpack.c.l.b16 %v59
    %v92 = vpack.c.b16 %v77, %v76
    %v93 = vpack.c.b16 %v79, %v78
    %v94 = vpack.c.b16 %v81, %v80
    %v95 = vpack.c.b16 %v83, %v82
    %v96 = vpack.c.b16 %v85, %v84
    %v97 = vpack.c.b16 %v87, %v86
    %v98 = vpack.c.b16 %v89, %v88
    %v99 = vpack.c.b16 %v91, %v90
    %108 = vmatprep.subr.bf16.mxu0 0
    %109 = vmatpush1.bf16.msra.mxu0 %v92
    %110 = vmatprep.subr.bf16.mxu0 0
    %111 = vmatpush1.bf16.msra.mxu0 %v93
    %112 = vmatprep.subr.bf16.mxu0 0
    %113 = vmatpush1.bf16.msra.mxu0 %v94
    %114 = vmatprep.subr.bf16.mxu0 0
    %115 = vmatpush1.bf16.msra.mxu0 %v95
    %116 = vmatprep.subr.bf16.mxu0 0
    %117 = vmatpush1.bf16.msra.mxu0 %v96
    %118 = vmatprep.subr.bf16.mxu0 0
    %119 = vmatpush1.bf16.msra.mxu0 %v97
    %120 = vmatprep.subr.bf16.mxu0 0
    %121 = vmatpush1.bf16.msra.mxu0 %v98
    %122 = vmatprep.subr.bf16.mxu0 0
    %123 = vmatpush1.bf16.msra.mxu0 %v99
    %124 = vmatprep.subr.bf16.mxu0 0
    %125 = vmatpush1.bf16.msra.mxu0 0
    %126 = vmatprep.subr.bf16.mxu0 0
    %127 = vmatpush1.bf16.msra.mxu0 0
    %128 = vmatprep.subr.bf16.mxu0 0
    %129 = vmatpush1.bf16.msra.mxu0 0
    %130 = vmatprep.subr.bf16.mxu0 0
    %131 = vmatpush1.bf16.msra.mxu0 0
    %132 = vmatprep.subr.bf16.mxu0 0
    %133 = vmatpush1.bf16.msra.mxu0 0
    %134 = vmatprep.subr.bf16.mxu0 0
    %135 = vmatpush1.bf16.msra.mxu0 0
    %136 = vmatprep.subr.bf16.mxu0 0
    %137 = vmatpush1.bf16.msra.mxu0 0
    %138 = vmatprep.subr.bf16.mxu0 0
    %139 = vmatpush1.bf16.msra.mxu0 0
    %140 = vmatprep.mubr.bf16.mxu0 0
    %141 = vmatmul.mubr.bf16.gmra.mrb[0].mxu0 %v43
    %v142 = vpop.f32.mrb[0].mxu0
    %v143 = vadd.f32 0.0, %v142
    %v144 = vpop.f32.mrb[0].mxu0
    %v145 = vpop.f32.mrb[0].mxu0
    %v146 = vpop.f32.mrb[0].mxu0
    %147 = vdwg.mxu0
    %v148 = vmul.f32 %v143, 0.00125
    %v149 = vld [vmem:[%s2] sm:$0x1]
    %v150 = vlaneseq
    %v151 = vshrl.u32 %v150, 7
    %v152 = vsub.s32 0, %v151
    %v153 = vrot.slane %v149, %v152
    %v154 = vadd.f32 %v148, %v153
    %vm155 = vcmp.ge.f32.partialorder %v154, 0.0
    %v156 = vmul.f32 %v154, 0.01
    %v157 = vsel %vm155, %v154, %v156
    %v158 = vpack.c.bf16 %v157, %v157
    %s159 = scalar_lea.vmem [#allocation5], 64
    %v160 = vld [vmem:[%s159] sm:$0xf]
    %v161 = vld [vmem:[%s159 + $0x4] sm:$0xf]
    %v162 = vld [vmem:[%s159 + $0x8] sm:$0xf]
    %v163 = vld [vmem:[%s159 + $0xc] sm:$0xf]
    %v164 = vld [vmem:[%s159 + $0x10] sm:$0xf]
    %v165 = vld [vmem:[%s159 + $0x14] sm:$0xf]
    %v166 = vld [vmem:[%s159 + $0x18] sm:$0xf]
    %v167 = vld [vmem:[%s159 + $0x1c] sm:$0xf]
    %v168 = vld [vmem:[%s159 + $0x20] sm:$0xf]
    %v169 = vld [vmem:[%s159 + $0x24] sm:$0xf]
    %v170 = vld [vmem:[%s159 + $0x28] sm:$0xf]
    %v171 = vld [vmem:[%s159 + $0x2c] sm:$0xf]
    %v172 = vld [vmem:[%s159 + $0x30] sm:$0xf]
    %v173 = vld [vmem:[%s159 + $0x34] sm:$0xf]
    %v174 = vld [vmem:[%s159 + $0x38] sm:$0xf]
    %v175 = vld [vmem:[%s159 + $0x3c] sm:$0xf]
    %v192 = vunpack.c.l.b16 %v160
    %v193 = vunpack.c.l.b16 %v161
    %v194 = vunpack.c.l.b16 %v162
    %v195 = vunpack.c.l.b16 %v163
    %v196 = vunpack.c.l.b16 %v164
    %v197 = vunpack.c.l.b16 %v165
    %v198 = vunpack.c.l.b16 %v166
    %v199 = vunpack.c.l.b16 %v167
    %v200 = vunpack.c.l.b16 %v168
    %v201 = vunpack.c.l.b16 %v169
    %v202 = vunpack.c.l.b16 %v170
    %v203 = vunpack.c.l.b16 %v171
    %v204 = vunpack.c.l.b16 %v172
    %v205 = vunpack.c.l.b16 %v173
    %v206 = vunpack.c.l.b16 %v174
    %v207 = vunpack.c.l.b16 %v175
    %v208 = vpack.c.b16 %v193, %v192
    %v209 = vpack.c.b16 %v195, %v194
    %v210 = vpack.c.b16 %v197, %v196
    %v211 = vpack.c.b16 %v199, %v198
    %v212 = vpack.c.b16 %v201, %v200
    %v213 = vpack.c.b16 %v203, %v202
    %v214 = vpack.c.b16 %v205, %v204
    %v215 = vpack.c.b16 %v207, %v206
    %224 = vmatprep.subr.bf16.mxu0 0
    %225 = vmatpush1.bf16.msra.mxu0 %v208
    %226 = vmatprep.subr.bf16.mxu0 0
    %227 = vmatpush1.bf16.msra.mxu0 %v209
    %228 = vmatprep.subr.bf16.mxu0 0
    %229 = vmatpush1.bf16.msra.mxu0 %v210
    %230 = vmatprep.subr.bf16.mxu0 0
    %231 = vmatpush1.bf16.msra.mxu0 %v211
    %232 = vmatprep.subr.bf16.mxu0 0
    %233 = vmatpush1.bf16.msra.mxu0 %v212
    %234 = vmatprep.subr.bf16.mxu0 0
    %235 = vmatpush1.bf16.msra.mxu0 %v213
    %236 = vmatprep.subr.bf16.mxu0 0
    %237 = vmatpush1.bf16.msra.mxu0 %v214
    %238 = vmatprep.subr.bf16.mxu0 0
    %239 = vmatpush1.bf16.msra.mxu0 %v215
    %240 = vmatprep.subr.bf16.mxu0 0
    %241 = vmatpush1.bf16.msra.mxu0 0
    %242 = vmatprep.subr.bf16.mxu0 0
    %243 = vmatpush1.bf16.msra.mxu0 0
    %244 = vmatprep.subr.bf16.mxu0 0
    %245 = vmatpush1.bf16.msra.mxu0 0
    %246 = vmatprep.subr.bf16.mxu0 0
    %247 = vmatpush1.bf16.msra.mxu0 0
    %248 = vmatprep.subr.bf16.mxu0 0
    %249 = vmatpush1.bf16.msra.mxu0 0
    %250 = vmatprep.subr.bf16.mxu0 0
    %251 = vmatpush1.bf16.msra.mxu0 0
    %252 = vmatprep.subr.bf16.mxu0 0
    %253 = vmatpush1.bf16.msra.mxu0 0
    %254 = vmatprep.subr.bf16.mxu0 0
    %255 = vmatpush1.bf16.msra.mxu0 0
    %256 = vmatprep.mubr.bf16.mxu0 0
    %257 = vmatmul.mubr.bf16.gmra.mrb[0].mxu0 %v158
    %v258 = vpop.f32.mrb[0].mxu0
    %v259 = vadd.f32 0.0, %v258
    %v260 = vpop.f32.mrb[0].mxu0
    %v261 = vpop.f32.mrb[0].mxu0
    %v262 = vpop.f32.mrb[0].mxu0
    %263 = vdwg.mxu0
    %v264 = vmul.f32 %v259, 0.00125
    %v265 = vld [vmem:[%s2 + $0x1] sm:$0x1]
    %v266 = vlaneseq
    %v267 = vshrl.u32 %v266, 7
    %v268 = vsub.s32 0, %v267
    %v269 = vrot.slane %v265, %v268
    %v270 = vadd.f32 %v264, %v269
    %vm271 = vcmp.ge.f32.partialorder %v270, 0.0
    %v272 = vmul.f32 %v270, 0.01
    %v273 = vsel %vm271, %v270, %v272
    %v274 = vpack.c.bf16 %v273, %v273
    %s275 = scalar_lea.vmem [#allocation5], 128
    %v276 = vld [vmem:[%s275] sm:$0xf]
    %v277 = vld [vmem:[%s275 + $0x4] sm:$0xf]
    %v278 = vld [vmem:[%s275 + $0x8] sm:$0xf]
    %v279 = vld [vmem:[%s275 + $0xc] sm:$0xf]
    %v280 = vld [vmem:[%s275 + $0x10] sm:$0xf]
    %v281 = vld [vmem:[%s275 + $0x14] sm:$0xf]
    %v282 = vld [vmem:[%s275 + $0x18] sm:$0xf]
    %v283 = vld [vmem:[%s275 + $0x1c] sm:$0xf]
    %v284 = vld [vmem:[%s275 + $0x20] sm:$0xf]
    %v285 = vld [vmem:[%s275 + $0x24] sm:$0xf]
    %v286 = vld [vmem:[%s275 + $0x28] sm:$0xf]
    %v287 = vld [vmem:[%s275 + $0x2c] sm:$0xf]
    %v288 = vld [vmem:[%s275 + $0x30] sm:$0xf]
    %v289 = vld [vmem:[%s275 + $0x34] sm:$0xf]
    %v290 = vld [vmem:[%s275 + $0x38] sm:$0xf]
    %v291 = vld [vmem:[%s275 + $0x3c] sm:$0xf]
    %v308 = vunpack.c.l.b16 %v276
    %v309 = vunpack.c.l.b16 %v277
    %v310 = vunpack.c.l.b16 %v278
    %v311 = vunpack.c.l.b16 %v279
    %v312 = vunpack.c.l.b16 %v280
    %v313 = vunpack.c.l.b16 %v281
    %v314 = vunpack.c.l.b16 %v282
    %v315 = vunpack.c.l.b16 %v283
    %v316 = vunpack.c.l.b16 %v284
    %v317 = vunpack.c.l.b16 %v285
    %v318 = vunpack.c.l.b16 %v286
    %v319 = vunpack.c.l.b16 %v287
    %v320 = vunpack.c.l.b16 %v288
    %v321 = vunpack.c.l.b16 %v289
    %v322 = vunpack.c.l.b16 %v290
    %v323 = vunpack.c.l.b16 %v291
    %v324 = vpack.c.b16 %v309, %v308
    %v325 = vpack.c.b16 %v311, %v310
    %v326 = vpack.c.b16 %v313, %v312
    %v327 = vpack.c.b16 %v315, %v314
    %v328 = vpack.c.b16 %v317, %v316
    %v329 = vpack.c.b16 %v319, %v318
    %v330 = vpack.c.b16 %v321, %v320
    %v331 = vpack.c.b16 %v323, %v322
    %340 = vmatprep.subr.bf16.mxu0 0
    %341 = vmatpush1.bf16.msra.mxu0 %v324
    %342 = vmatprep.subr.bf16.mxu0 0
    %343 = vmatpush1.bf16.msra.mxu0 %v325
    %344 = vmatprep.subr.bf16.mxu0 0
    %345 = vmatpush1.bf16.msra.mxu0 %v326
    %346 = vmatprep.subr.bf16.mxu0 0
    %347 = vmatpush1.bf16.msra.mxu0 %v327
    %348 = vmatprep.subr.bf16.mxu0 0
    %349 = vmatpush1.bf16.msra.mxu0 %v328
    %350 = vmatprep.subr.bf16.mxu0 0
    %351 = vmatpush1.bf16.msra.mxu0 %v329
    %352 = vmatprep.subr.bf16.mxu0 0
    %353 = vmatpush1.bf16.msra.mxu0 %v330
    %354 = vmatprep.subr.bf16.mxu0 0
    %355 = vmatpush1.bf16.msra.mxu0 %v331
    %356 = vmatprep.subr.bf16.mxu0 0
    %357 = vmatpush1.bf16.msra.mxu0 0
    %358 = vmatprep.subr.bf16.mxu0 0
    %359 = vmatpush1.bf16.msra.mxu0 0
    %360 = vmatprep.subr.bf16.mxu0 0
    %361 = vmatpush1.bf16.msra.mxu0 0
    %362 = vmatprep.subr.bf16.mxu0 0
    %363 = vmatpush1.bf16.msra.mxu0 0
    %364 = vmatprep.subr.bf16.mxu0 0
    %365 = vmatpush1.bf16.msra.mxu0 0
    %366 = vmatprep.subr.bf16.mxu0 0
    %367 = vmatpush1.bf16.msra.mxu0 0
    %368 = vmatprep.subr.bf16.mxu0 0
    %369 = vmatpush1.bf16.msra.mxu0 0
    %370 = vmatprep.subr.bf16.mxu0 0
    %371 = vmatpush1.bf16.msra.mxu0 0
    %372 = vmatprep.mubr.bf16.mxu0 0
    %373 = vmatmul.mubr.bf16.gmra.mrb[0].mxu0 %v274
    %v374 = vpop.f32.mrb[0].mxu0
    %v375 = vadd.f32 0.0, %v374
    %v376 = vpop.f32.mrb[0].mxu0
    %v377 = vpop.f32.mrb[0].mxu0
    %v378 = vpop.f32.mrb[0].mxu0
    %379 = vdwg.mxu0
    %v380 = vmul.f32 %v375, 0.00125
    %v381 = vld [vmem:[%s2 + $0x2] sm:$0x1]
    %v382 = vlaneseq
    %v383 = vshrl.u32 %v382, 7
    %v384 = vsub.s32 0, %v383
    %v385 = vrot.slane %v381, %v384
    %v386 = vadd.f32 %v380, %v385
    %vm387 = vcmp.ge.f32.partialorder %v386, 0.0
    %v388 = vmul.f32 %v386, 0.01
    %v389 = vsel %vm387, %v386, %v388
    %v390 = vpack.c.bf16 %v389, %v389
    %s391 = scalar_lea.vmem [#allocation5], 192
    %v392 = vld [vmem:[%s391] sm:$0xf]
    %v393 = vld [vmem:[%s391 + $0x4] sm:$0xf]
    %v394 = vld [vmem:[%s391 + $0x8] sm:$0xf]
    %v395 = vld [vmem:[%s391 + $0xc] sm:$0xf]
    %v396 = vld [vmem:[%s391 + $0x10] sm:$0xf]
    %v397 = vld [vmem:[%s391 + $0x14] sm:$0xf]
    %v398 = vld [vmem:[%s391 + $0x18] sm:$0xf]
    %v399 = vld [vmem:[%s391 + $0x1c] sm:$0xf]
    %v400 = vld [vmem:[%s391 + $0x20] sm:$0xf]
    %v401 = vld [vmem:[%s391 + $0x24] sm:$0xf]
    %v402 = vld [vmem:[%s391 + $0x28] sm:$0xf]
    %v403 = vld [vmem:[%s391 + $0x2c] sm:$0xf]
    %v404 = vld [vmem:[%s391 + $0x30] sm:$0xf]
    %v405 = vld [vmem:[%s391 + $0x34] sm:$0xf]
    %v406 = vld [vmem:[%s391 + $0x38] sm:$0xf]
    %v407 = vld [vmem:[%s391 + $0x3c] sm:$0xf]
    %v424 = vunpack.c.l.b16 %v392
    %v425 = vunpack.c.l.b16 %v393
    %v426 = vunpack.c.l.b16 %v394
    %v427 = vunpack.c.l.b16 %v395
    %v428 = vunpack.c.l.b16 %v396
    %v429 = vunpack.c.l.b16 %v397
    %v430 = vunpack.c.l.b16 %v398
    %v431 = vunpack.c.l.b16 %v399
    %v432 = vunpack.c.l.b16 %v400
    %v433 = vunpack.c.l.b16 %v401
    %v434 = vunpack.c.l.b16 %v402
    %v435 = vunpack.c.l.b16 %v403
    %v436 = vunpack.c.l.b16 %v404
    %v437 = vunpack.c.l.b16 %v405
    %v438 = vunpack.c.l.b16 %v406
    %v439 = vunpack.c.l.b16 %v407
    %v440 = vpack.c.b16 %v425, %v424
    %v441 = vpack.c.b16 %v427, %v426
    %v442 = vpack.c.b16 %v429, %v428
    %v443 = vpack.c.b16 %v431, %v430
    %v444 = vpack.c.b16 %v433, %v432
    %v445 = vpack.c.b16 %v435, %v434
    %v446 = vpack.c.b16 %v437, %v436
    %v447 = vpack.c.b16 %v439, %v438
    %456 = vmatprep.subr.bf16.mxu0 0
    %457 = vmatpush1.bf16.msra.mxu0 %v440
    %458 = vmatprep.subr.bf16.mxu0 0
    %459 = vmatpush1.bf16.msra.mxu0 %v441
    %460 = vmatprep.subr.bf16.mxu0 0
    %461 = vmatpush1.bf16.msra.mxu0 %v442
    %462 = vmatprep.subr.bf16.mxu0 0
    %463 = vmatpush1.bf16.msra.mxu0 %v443
    %464 = vmatprep.subr.bf16.mxu0 0
    %465 = vmatpush1.bf16.msra.mxu0 %v444
    %466 = vmatprep.subr.bf16.mxu0 0
    %467 = vmatpush1.bf16.msra.mxu0 %v445
    %468 = vmatprep.subr.bf16.mxu0 0
    %469 = vmatpush1.bf16.msra.mxu0 %v446
    %470 = vmatprep.subr.bf16.mxu0 0
    %471 = vmatpush1.bf16.msra.mxu0 %v447
    %472 = vmatprep.subr.bf16.mxu0 0
    %473 = vmatpush1.bf16.msra.mxu0 0
    %474 = vmatprep.subr.bf16.mxu0 0
    %475 = vmatpush1.bf16.msra.mxu0 0
    %476 = vmatprep.subr.bf16.mxu0 0
    %477 = vmatpush1.bf16.msra.mxu0 0
    %478 = vmatprep.subr.bf16.mxu0 0
    %479 = vmatpush1.bf16.msra.mxu0 0
    %480 = vmatprep.subr.bf16.mxu0 0
    %481 = vmatpush1.bf16.msra.mxu0 0
    %482 = vmatprep.subr.bf16.mxu0 0
    %483 = vmatpush1.bf16.msra.mxu0 0
    %484 = vmatprep.subr.bf16.mxu0 0
    %485 = vmatpush1.bf16.msra.mxu0 0
    %486 = vmatprep.subr.bf16.mxu0 0
    %487 = vmatpush1.bf16.msra.mxu0 0
    %488 = vmatprep.mubr.bf16.mxu0 0
    %489 = vmatmul.mubr.bf16.gmra.mrb[0].mxu0 %v390
    %v490 = vpop.f32.mrb[0].mxu0
    %v491 = vadd.f32 0.0, %v490
    %v492 = vpop.f32.mrb[0].mxu0
    %v493 = vpop.f32.mrb[0].mxu0
    %v494 = vpop.f32.mrb[0].mxu0
    %495 = vdwg.mxu0
    %v496 = vmul.f32 %v491, 0.00125
    %v497 = vld [vmem:[%s2 + $0x3] sm:$0x1]
    %v498 = vlaneseq
    %v499 = vshrl.u32 %v498, 7
    %v500 = vsub.s32 0, %v499
    %v501 = vrot.slane %v497, %v500
    %v502 = vadd.f32 %v496, %v501
    %vm503 = vcmp.ge.f32.partialorder %v502, 0.0
    %v504 = vmul.f32 %v502, 0.01
    %v505 = vsel %vm503, %v502, %v504
    %506 = vst [vmem:[#allocation7] sm:$0xff] %v505
    // Predicated region
    $region22: #{tpu_custom_call.1} parent=1 // pred_check
      _
    $region23: #{tpu_custom_call.1} parent=1 // pred_check_branch
      %508 = sbr.rel (0) target = $region25
    $region24: #{tpu_custom_call.1} parent=1 // pred_region
      %s510 = ssub.s32 128, 128
      %511 = vsyncadd [#allocation4], %s510
      %s513 = sshll.u32 [#allocation7], 4
      %s514 = int_to_ptr.vmem [resolvable:$true] %s513
      %516 = dma.vmem_to_hbm [thread:$0]  %s514, 128, %s3, [#allocation4]
    $region25: #{tpu_custom_call.1} parent=1 // pred_fallthru
      _
    // Predicated region
    $region26: #{tpu_custom_call.1} parent=1 // pred_check
      _
    $region27: #{tpu_custom_call.1} parent=1 // pred_check_branch
      %518 = sbr.rel (0) target = $region29
    $region28: #{tpu_custom_call.1} parent=1 // pred_region
      %519 = dma.done [#allocation4], 128
    $region29: #{tpu_custom_call.1} parent=1 // pred_fallthru
      _
    %520 = vsyncpa [#allocation3], 1
    %521 = vsyncpa [#allocation6], 1
    %522 = vsyncpa [#allocation4], 1

</llo_original>
